<compile_context>
chip_gen: v5e
topology: v5e:2x2
jax: 0.10.0
libtpu: 0.0.40
codegen_flags: <defaults>
</compile_context>

<pallas_src>
import jax
import jax.numpy as jnp
from jax.experimental import pallas as pl
from jax.experimental.pallas import tpu as pltpu

INPUT_SIZE = 20
OUTPUT_SIZE = 1

# Whole-resident (no grid) path up to this many rows: ~1 KiB/row lane-padded
# (x + out) -> 8 MiB, safe inside v5e's 16 MiB default scoped VMEM.
GRIDLESS_MAX_ROWS = 8192
# Grid-path row tile: double-buffered lane-padded x + out ~= 8 MiB total.
BLOCK_ROWS = 4096


def _linear_kernel(b_ref, x_ref, w_ref, o_ref):
    # b_ref: (1,)       in SMEM (scalar bias)
    # x_ref: (rows, in) in VMEM
    # w_ref: (1, in)    in VMEM (weight row, kept resident across grid steps)
    # o_ref: (rows, 1)  in VMEM
    x = x_ref[...]                                   # (rows, in)
    w_row = w_ref[...]                               # (1, in) broadcast row
    # VPU multiply + XLU cross-lane reduce; MXU stays idle on purpose
    # (out_features == 1 would give ~0% MXU utilization).  Exact f32.
    y = jnp.sum(x * w_row, axis=-1, keepdims=True)   # (rows, 1) f32
    o_ref[...] = (y + b_ref[0]).astype(o_ref.dtype)


def linear_forward(x, w, b, *,
                   gridless_max_rows=GRIDLESS_MAX_ROWS,
                   block_rows=BLOCK_ROWS):
    """x: (B, in) f32, w: (in, 1) f32, b: (1,) f32 -> (B, 1) f32."""
    B, in_f = x.shape
    out_f = w.shape[1]
    assert out_f == 1, "kernel is specialized for output_size == 1"

    w_row = w.reshape(1, in_f).astype(jnp.float32)   # (1, in): lane-dense weight row
    b1 = b.reshape(out_f).astype(jnp.float32)        # (1,) scalar bias for SMEM

    if B <= gridless_max_rows:
        # Small/medium batch: gridless call, whole arrays resident in VMEM,
        # bias in SMEM.  No pipeline prologue/epilogue, no padding, no slicing.
        return pl.pallas_call(
            _linear_kernel,
            out_shape=jax.ShapeDtypeStruct((B, out_f), jnp.float32),
            in_specs=[
                pl.BlockSpec(memory_space=pltpu.MemorySpace.SMEM),  # bias
                pl.BlockSpec(memory_space=pltpu.MemorySpace.VMEM),  # x
                pl.BlockSpec(memory_space=pltpu.MemorySpace.VMEM),  # w_row
            ],
            out_specs=pl.BlockSpec(memory_space=pltpu.MemorySpace.VMEM),
        )(b1, x, w_row)

    # Large batch: tile only the batch axis; W / bias stay resident per step.
    # No padding / slicing: Pallas masks the writes of the ragged last block,
    # so x is streamed from HBM exactly once.
    tm = block_rows                                   # multiple of 8 (f32 sublane)
    n_blocks = pl.cdiv(B, tm)                         # >= 3 given the gridless cutoff

    return pl.pallas_call(
        _linear_kernel,
        out_shape=jax.ShapeDtypeStruct((B, out_f), jnp.float32),
        grid=(n_blocks,),
        in_specs=[
            pl.BlockSpec(memory_space=pltpu.MemorySpace.SMEM),      # bias (whole)
            pl.BlockSpec((tm, in_f), lambda i: (i, 0)),             # x row tile
            pl.BlockSpec((1, in_f), lambda i: (0, 0)),              # w_row (resident)
        ],
        out_specs=pl.BlockSpec((tm, out_f), lambda i: (i, 0)),
        compiler_params=pltpu.CompilerParams(
            dimension_semantics=("parallel",)),                     # v7x: 2 TCs split batch
    )(b1, x, w_row)


def init_params(key, in_f, out_f):
    # Deterministic init mimicking nn.Linear: U(-1/sqrt(in), 1/sqrt(in)).
    kw, kb = jax.random.split(key)
    bound = 1.0 / jnp.sqrt(jnp.float32(in_f))
    w = jax.random.uniform(kw, (in_f, out_f), jnp.float32, -bound, bound)
    b = jax.random.uniform(kb, (out_f,), jnp.float32, -bound, bound)
    return w, b


if __name__ == "__main__":
    key = jax.random.PRNGKey(0)
    k_x, k_p = jax.random.split(key)
    w, b = init_params(k_p, INPUT_SIZE, OUTPUT_SIZE)

    def reference(xv):
        # Exact f32 elementwise reference (avoids default bf16 MXU noise).
        return jnp.sum(xv * w.reshape(1, -1), axis=-1, keepdims=True) + b[None, :]

    # 1) Small batch (gridless path) — matches the module's intended tiny shapes.
    batch = 8
    x = jax.random.normal(k_x, (batch, INPUT_SIZE), jnp.float32)
    y = linear_forward(x, w, b)
    jax.block_until_ready(y)
    assert y.shape == (batch, OUTPUT_SIZE)
    assert jnp.allclose(y, reference(x), atol=1e-5, rtol=1e-5)

    # 2) Medium batch (B=1000) — now also gridless: no pad, no slice, no grid.
    x_med = jax.random.normal(k_x, (1000, INPUT_SIZE), jnp.float32)
    y_med = linear_forward(x_med, w, b)
    jax.block_until_ready(y_med)
    assert y_med.shape == (1000, OUTPUT_SIZE)
    assert jnp.allclose(y_med, reference(x_med), atol=1e-5, rtol=1e-5)

    # 3) Large batch (grid path) — non-multiple of 4096 exercises the ragged
    #    (masked) last block with no padding pass.
    big_batch = 20000
    x_big = jax.random.normal(k_x, (big_batch, INPUT_SIZE), jnp.float32)
    y_big = linear_forward(x_big, w, b)
    jax.block_until_ready(y_big)
    assert y_big.shape == (big_batch, OUTPUT_SIZE)
    assert jnp.allclose(y_big, reference(x_big), atol=1e-5, rtol=1e-5)

    print("KERNEL_OK")
</pallas_src>

<mosaic_0001>
module attributes {stable_mosaic.version = 11 : i64} {
  func.func @_linear_kernel(%arg0: memref<1xf32, #tpu.memory_space<smem>>, %arg1: memref<8x20xf32, #tpu.memory_space<vmem>>, %arg2: memref<1x20xf32, #tpu.memory_space<vmem>>, %arg3: memref<8x1xf32, #tpu.memory_space<vmem>>) attributes {dimension_semantics = [], scalar_prefetch = 0 : i64, scratch_operands = 0 : i64, tpu.core_type = #tpu.core_type<tc>} {
    %c0 = arith.constant 0 : index
    %c0_0 = arith.constant 0 : index
    %0 = vector.load %arg1[%c0, %c0_0] : memref<8x20xf32, #tpu.memory_space<vmem>>, vector<8x20xf32>
    %c0_1 = arith.constant 0 : index
    %c0_2 = arith.constant 0 : index
    %1 = vector.load %arg2[%c0_1, %c0_2] : memref<1x20xf32, #tpu.memory_space<vmem>>, vector<1x20xf32>
    %2 = vector.broadcast %1 : vector<1x20xf32> to vector<8x20xf32>
    %3 = arith.mulf %0, %2 : vector<8x20xf32>
    %cst = arith.constant dense<0.000000e+00> : vector<8xf32>
    %4 = vector.multi_reduction <add>, %3, %cst [1] : vector<8x20xf32> to vector<8xf32>
    %5 = vector.shape_cast %4 : vector<8xf32> to vector<8x1xf32>
    %c0_3 = arith.constant 0 : index
    %6 = memref.load %arg0[%c0_3] : memref<1xf32, #tpu.memory_space<smem>>
    %7 = vector.broadcast %6 : f32 to vector<8x1xf32>
    %8 = arith.addf %5, %7 : vector<8x1xf32>
    %c0_4 = arith.constant 0 : index
    %c0_5 = arith.constant 0 : index
    %9 = vector.load %arg3[%c0_4, %c0_5] : memref<8x1xf32, #tpu.memory_space<vmem>>, vector<8x1xf32>
    tpu.vector_store %arg3[%c0_4, %c0_5], %8 {strides = array<i32>} : memref<8x1xf32, #tpu.memory_space<vmem>>, vector<8x1xf32>,
    return
  }
}

</mosaic_0001>

<llo_original>
// kernel: tpu_custom_call.1
$region0: #{tpu_custom_call.1}
  #allocation0 [shape = 'u32[]', space=smem, size = 0x4, offset = 0x4, fixed_abs, tag = 'smem constant byte address 0x4 - core index']
  #allocation1 [shape = 'u32[72,128]{1,0:T(1,128)}', space=vmem, size = 0x9000, scoped, tag = 'internal scratch']
  #allocation2 [shape = 'f32[1]{0:T(128)S(6)}', space=smem, size = 0x200, scoped, tag = 'scoped memory for tpu_custom_call.1']
  %s0 = inlined_call_operand.<no memory space> [shape: f32[1], index: 0, kind: input, shape index: {}]
  %s1 = inlined_call_operand.hbm [shape: f32[8,20], index: 1, kind: input, shape index: {}]
  %s2 = inlined_call_operand.vmem [shape: f32[1,20], index: 2, kind: input, shape index: {}]
  %s3 = inlined_call_operand.vmem [shape: f32[8,1], index: 3, kind: output, shape index: {}]
  %s4 = sld [smem:[#allocation0]]
  $region26: #{tpu_custom_call.1} parent=0
    _
  %s6 = ssub.s32 1, %s4
  %s7 = scalar_select 0, %s6, %s4
  %8 = sst [smem:[#allocation2]] %s0
  $region1: #{tpu_custom_call.1} parent=0
    #allocation3 [shape = 'u8[4096]{0}', space=vmem, size = 0x1000, scoped, tag = 'input window, operand 1, single buffered']
    #allocation4 [shape = 's32[1]{0}', space=sflag, size = 0x4, scoped, tag = 'scoped memory for tpu_custom_call.1']
    %9 = vsyncpa [#allocation4], 0
    // Predicated region
    $region2: #{tpu_custom_call.1} parent=1 // pred_check
      _
    $region3: #{tpu_custom_call.1} parent=1 // pred_check_branch
      %11 = sbr.rel (0) target = $region5
    $region4: #{tpu_custom_call.1} parent=1 // pred_region
      _
    $region5: #{tpu_custom_call.1} parent=1 // pred_fallthru
      _
    // Predicated region
    $region6: #{tpu_custom_call.1} parent=1 // pred_check
      _
    $region7: #{tpu_custom_call.1} parent=1 // pred_check_branch
      %13 = sbr.rel (0) target = $region9
    $region8: #{tpu_custom_call.1} parent=1 // pred_region
      %15 = vsyncadd [#allocation4], 0
      %s17 = sshll.u32 %s1, 4
      %s18 = int_to_ptr.hbm [resolvable:$true] %s17
      %s19 = sshll.u32 [#allocation3], 4
      %s20 = int_to_ptr.vmem [resolvable:$true] %s19
      %22 = dma.hbm_to_vmem [thread:$0]  %s18, 128, %s20, [#allocation4]
    $region9: #{tpu_custom_call.1} parent=1 // pred_fallthru
      _
    // Predicated region
    $region10: #{tpu_custom_call.1} parent=1 // pred_check
      _
    $region11: #{tpu_custom_call.1} parent=1 // pred_check_branch
      %24 = sbr.rel (0) target = $region13
    $region12: #{tpu_custom_call.1} parent=1 // pred_region
      _
    $region13: #{tpu_custom_call.1} parent=1 // pred_fallthru
      _
    // Predicated region
    $region14: #{tpu_custom_call.1} parent=1 // pred_check
      _
    $region15: #{tpu_custom_call.1} parent=1 // pred_check_branch
      %26 = sbr.rel (0) target = $region17
    $region16: #{tpu_custom_call.1} parent=1 // pred_region
      %28 = dma.done [#allocation4], 128
    $region17: #{tpu_custom_call.1} parent=1 // pred_fallthru
      _
    %v29 = vld [vmem:[#allocation3] sm:$0xff]
    %v30 = vld [vmem:[%s2] sm:$0x1]
    %v32 = vperm.slane %v30, 0
    %v34 = vmul.f32 %v29, %v32
    %vm35 = vcmask 162816
    %v36 = vsel %vm35, %v34, 0.0
    %37 = vadd.xlane.f32.xlu0 %v36
    %v38 = vpop.xlane.xlu0 %37
    %s39 = sld [smem:[#allocation2]]
    %v40 = vstv %s39
    %v41 = vadd.f32 %v38, %v40
    %vm42 = vcmask 7168
    %43 = vst.msk [vmem:[%s3] sm:$0xff] %vm42, %v41
    // Predicated region
    $region18: #{tpu_custom_call.1} parent=1 // pred_check
      _
    $region19: #{tpu_custom_call.1} parent=1 // pred_check_branch
      %45 = sbr.rel (0) target = $region21
    $region20: #{tpu_custom_call.1} parent=1 // pred_region
      _
    $region21: #{tpu_custom_call.1} parent=1 // pred_fallthru
      _
    // Predicated region
    $region22: #{tpu_custom_call.1} parent=1 // pred_check
      _
    $region23: #{tpu_custom_call.1} parent=1 // pred_check_branch
      %47 = sbr.rel (0) target = $region25
    $region24: #{tpu_custom_call.1} parent=1 // pred_region
      _
    $region25: #{tpu_custom_call.1} parent=1 // pred_fallthru
      _
    %48 = vsyncpa [#allocation4], 1

</llo_original>
